<compile_context>
chip_gen: v7x
topology: tpu7x:2x2x1
jax: 0.10.0
libtpu: 0.0.40
codegen_flags: <defaults>
</compile_context>

<pallas_src>
import jax
import jax.numpy as jnp
from jax.experimental import pallas as pl
from jax.experimental.pallas import tpu as pltpu

EPS = 1e-3


def _bn_conv_kernel(x_ref, gamma_ref, beta_ref, w_ref, o_ref):
    # x_ref:     [M, C_in]          f32   (M = N*H*W, full array, resident)
    # gamma_ref: [1, C_in]          f32
    # beta_ref:  [1, C_in]          f32
    # w_ref:     [C_in, C_out_blk]  bf16  (already transposed + cast in wrapper)
    # o_ref:     [M, C_out_blk]     f32
    x = x_ref[...].astype(jnp.float32)

    # BatchNorm2d, training-mode batch stats: per-channel mean / biased variance
    # over (N, H, W).  Reduction is over the sublane axis (cheap); the centered
    # tensor xc is reused for both the variance and the normalization.
    mean = jnp.mean(x, axis=0, keepdims=True)            # [1, C_in]
    xc = x - mean
    var = jnp.mean(xc * xc, axis=0, keepdims=True)       # [1, C_in]
    scale = gamma_ref[...] * jax.lax.rsqrt(var + EPS)    # [1, C_in] fused scale
    x_norm = xc * scale + beta_ref[...]                  # one mul + one add / elem

    # 1x1 conv == matmul over channels.  bf16 operands, f32 accumulation (MXU).
    o_ref[...] = jnp.dot(
        x_norm.astype(jnp.bfloat16),
        w_ref[...],
        preferred_element_type=jnp.float32,
    ).astype(o_ref.dtype)


def bn_conv2d_1x1(x_nchw, gamma, beta, weight):
    """x_nchw: [N, C_in, H, W]; gamma/beta: [C_in]; weight: [C_out, C_in, 1, 1]."""
    N, C_in, H, W = x_nchw.shape
    C_out = weight.shape[0]
    M = N * H * W

    # NCHW -> NHWC-flattened [M, C_in] so channels land on lanes.
    x_mc = jnp.transpose(x_nchw, (0, 2, 3, 1)).reshape(M, C_in)
    # Weight [C_out, C_in, 1, 1] -> [C_in, C_out], pre-cast to bf16 (halves DMA).
    w_t = jnp.transpose(weight.reshape(C_out, C_in)).astype(jnp.bfloat16)
    gamma2d = gamma.reshape(1, C_in).astype(jnp.float32)
    beta2d = beta.reshape(1, C_in).astype(jnp.float32)

    # Split C_out so v7x's two TensorCores each get a block (harmless on 1-TC chips).
    c_out_blk = 768 if C_out % 768 == 0 else C_out
    n_blocks = C_out // c_out_blk

    # TODO(synk): if M = N*H*W ever grows beyond a few thousand, add an M grid
    # axis (weight block kept resident) instead of the whole-M block used here.
    out_mc = pl.pallas_call(
        _bn_conv_kernel,
        out_shape=jax.ShapeDtypeStruct((M, C_out), x_nchw.dtype),
        grid=(n_blocks,),
        in_specs=[
            pl.BlockSpec((M, C_in), lambda j: (0, 0)),        # x, resident
            pl.BlockSpec((1, C_in), lambda j: (0, 0)),        # gamma
            pl.BlockSpec((1, C_in), lambda j: (0, 0)),        # beta
            pl.BlockSpec((C_in, c_out_blk), lambda j: (0, j)),  # weight slice
        ],
        out_specs=pl.BlockSpec((M, c_out_blk), lambda j: (0, j)),
        compiler_params=pltpu.CompilerParams(
            dimension_semantics=("parallel",),
        ),
    )(x_mc, gamma2d, beta2d, w_t)

    # [M, C_out] (== NHWC flattened) -> NCHW to match the PyTorch module.
    return jnp.transpose(out_mc.reshape(N, H, W, C_out), (0, 3, 1, 2))


# TODO(synk): running_mean / running_var momentum updates (stateful BN side
# effect) are not emitted; only the forward output is produced.


def _reference(x_nchw, gamma, beta, weight):
    """Pure-JAX f32 reference of BN(train) + 1x1 conv, for a sanity check."""
    mean = jnp.mean(x_nchw, axis=(0, 2, 3), keepdims=True)
    var = jnp.mean((x_nchw - mean) ** 2, axis=(0, 2, 3), keepdims=True)
    x_norm = (x_nchw - mean) * jax.lax.rsqrt(var + EPS)
    x_norm = x_norm * gamma.reshape(1, -1, 1, 1) + beta.reshape(1, -1, 1, 1)
    w2d = weight.reshape(weight.shape[0], weight.shape[1])
    return jnp.einsum("oc,nchw->nohw", w2d, x_norm)


if __name__ == "__main__":
    # Shapes implied by the module: x [1, 256, 7, 7], conv 256 -> 1536.
    N, C_IN, H, W = 1, 256, 7, 7
    C_OUT = 1536

    key = jax.random.PRNGKey(0)
    kx, kg, kb, kw = jax.random.split(key, 4)

    x = jax.random.normal(kx, (N, C_IN, H, W), dtype=jnp.float32)
    gamma = 1.0 + 0.1 * jax.random.normal(kg, (C_IN,), dtype=jnp.float32)
    beta = 0.1 * jax.random.normal(kb, (C_IN,), dtype=jnp.float32)
    weight = 0.05 * jax.random.normal(kw, (C_OUT, C_IN, 1, 1), dtype=jnp.float32)

    out = bn_conv2d_1x1(x, gamma, beta, weight)
    jax.block_until_ready(out)

    assert out.shape == (N, C_OUT, H, W), out.shape

    # Loose tolerance: matmul operands are bf16 (f32 accumulation).
    ref = _reference(x, gamma, beta, weight)
    max_err = float(jnp.max(jnp.abs(out - ref)))
    assert max_err < 0.1, f"max abs err {max_err}"

    print("KERNEL_OK")
</pallas_src>

<mosaic_0001>
module attributes {stable_mosaic.version = 11 : i64} {
  func.func @_bn_conv_kernel(%arg0: i32, %arg1: memref<49x256xf32, #tpu.memory_space<vmem>>, %arg2: memref<1x256xf32, #tpu.memory_space<vmem>>, %arg3: memref<1x256xf32, #tpu.memory_space<vmem>>, %arg4: memref<256x768xbf16, #tpu.memory_space<vmem>>, %arg5: memref<49x768xf32, #tpu.memory_space<vmem>>) attributes {dimension_semantics = [#tpu.dimension_semantics<parallel>], iteration_bounds = array<i64: 2>, scalar_prefetch = 0 : i64, scratch_operands = 0 : i64, tpu.core_type = #tpu.core_type<tc>, window_params = [{pipeline_mode = #tpu.pipeline_mode<synchronous>, transform_indices = @transform_0, window_bounds = array<i64: 49, 256>}, {pipeline_mode = #tpu.pipeline_mode<synchronous>, transform_indices = @transform_1, window_bounds = array<i64: 1, 256>}, {pipeline_mode = #tpu.pipeline_mode<synchronous>, transform_indices = @transform_2, window_bounds = array<i64: 1, 256>}, {transform_indices = @transform_3, window_bounds = array<i64: 256, 768>}, {transform_indices = @transform_4, window_bounds = array<i64: 49, 768>}]} {
    %c0 = arith.constant 0 : index
    %c0_0 = arith.constant 0 : index
    %0 = vector.load %arg1[%c0, %c0_0] : memref<49x256xf32, #tpu.memory_space<vmem>>, vector<49x256xf32>
    %cst = arith.constant dense<0.000000e+00> : vector<256xf32>
    %1 = vector.multi_reduction <add>, %0, %cst [0] : vector<49x256xf32> to vector<256xf32>
    %2 = vector.shape_cast %1 : vector<256xf32> to vector<1x256xf32>
    %cst_1 = arith.constant 4.900000e+01 : f32
    %3 = vector.broadcast %cst_1 : f32 to vector<1x256xf32>
    %4 = arith.divf %2, %3 : vector<1x256xf32>
    %5 = vector.broadcast %4 : vector<1x256xf32> to vector<49x256xf32>
    %6 = arith.subf %0, %5 : vector<49x256xf32>
    %7 = arith.mulf %6, %6 : vector<49x256xf32>
    %cst_2 = arith.constant dense<0.000000e+00> : vector<256xf32>
    %8 = vector.multi_reduction <add>, %7, %cst_2 [0] : vector<49x256xf32> to vector<256xf32>
    %9 = vector.shape_cast %8 : vector<256xf32> to vector<1x256xf32>
    %cst_3 = arith.constant 4.900000e+01 : f32
    %10 = vector.broadcast %cst_3 : f32 to vector<1x256xf32>
    %11 = arith.divf %9, %10 : vector<1x256xf32>
    %c0_4 = arith.constant 0 : index
    %c0_5 = arith.constant 0 : index
    %12 = vector.load %arg2[%c0_4, %c0_5] : memref<1x256xf32, #tpu.memory_space<vmem>>, vector<1x256xf32>
    %cst_6 = arith.constant 1.000000e-03 : f32
    %13 = vector.broadcast %cst_6 : f32 to vector<1x256xf32>
    %14 = arith.addf %11, %13 : vector<1x256xf32>
    %15 = math.rsqrt %14 : vector<1x256xf32>
    %16 = arith.mulf %12, %15 : vector<1x256xf32>
    %17 = vector.broadcast %16 : vector<1x256xf32> to vector<49x256xf32>
    %18 = arith.mulf %6, %17 : vector<49x256xf32>
    %c0_7 = arith.constant 0 : index
    %c0_8 = arith.constant 0 : index
    %19 = vector.load %arg3[%c0_7, %c0_8] : memref<1x256xf32, #tpu.memory_space<vmem>>, vector<1x256xf32>
    %20 = vector.broadcast %19 : vector<1x256xf32> to vector<49x256xf32>
    %21 = arith.addf %18, %20 : vector<49x256xf32>
    %22 = arith.truncf %21 : vector<49x256xf32> to vector<49x256xbf16>
    %c0_9 = arith.constant 0 : index
    %c0_10 = arith.constant 0 : index
    %23 = vector.load %arg4[%c0_9, %c0_10] : memref<256x768xbf16, #tpu.memory_space<vmem>>, vector<256x768xbf16>
    %cst_11 = arith.constant dense<0.000000e+00> : vector<49x768xf32>
    %24 = tpu.matmul %22, %23, %cst_11 {dimension_numbers = #tpu.dot_dimension_numbers<[1], [0], [0], [1], [0, 0, 1, 1], [], []>} : vector<49x256xbf16>, vector<256x768xbf16>, vector<49x768xf32> -> vector<49x768xf32>
    %c0_12 = arith.constant 0 : index
    %c0_13 = arith.constant 0 : index
    %25 = vector.load %arg5[%c0_12, %c0_13] : memref<49x768xf32, #tpu.memory_space<vmem>>, vector<49x768xf32>
    tpu.vector_store %arg5[%c0_12, %c0_13], %24 {strides = array<i32>} : memref<49x768xf32, #tpu.memory_space<vmem>>, vector<49x768xf32>,
    return
  }
  func.func @transform_0(%arg0: i32) -> (i32, i32) {
    %c0_i32 = arith.constant 0 : i32
    %c0_i32_0 = arith.constant 0 : i32
    %c0_i32_1 = arith.constant 0 : i32
    return %c0_i32, %c0_i32_0 : i32, i32
  }
  func.func @transform_1(%arg0: i32) -> (i32, i32) {
    %c0_i32 = arith.constant 0 : i32
    %c0_i32_0 = arith.constant 0 : i32
    %c0_i32_1 = arith.constant 0 : i32
    return %c0_i32, %c0_i32_0 : i32, i32
  }
  func.func @transform_2(%arg0: i32) -> (i32, i32) {
    %c0_i32 = arith.constant 0 : i32
    %c0_i32_0 = arith.constant 0 : i32
    %c0_i32_1 = arith.constant 0 : i32
    return %c0_i32, %c0_i32_0 : i32, i32
  }
  func.func @transform_3(%arg0: i32) -> (i32, i32) {
    %c0_i32 = arith.constant 0 : i32
    %c0_i32_0 = arith.constant 0 : i32
    return %c0_i32, %arg0 : i32, i32
  }
  func.func @transform_4(%arg0: i32) -> (i32, i32) {
    %c0_i32 = arith.constant 0 : i32
    %c0_i32_0 = arith.constant 0 : i32
    return %c0_i32, %arg0 : i32, i32
  }
}

</mosaic_0001>

<llo_original>
// kernel: tpu_custom_call.1
$region0: #{tpu_custom_call.1}
  #allocation0 [shape = 'u32[]', space=smem, size = 0x4, offset = 0x4, fixed_abs, tag = 'smem constant byte address 0x4 - core index']
  #allocation1 [shape = 'u32[144,128]{1,0:T(1,128)}', space=vmem, size = 0x12000, scoped, tag = 'internal scratch']
  %s0 = inlined_call_operand.hbm [shape: f32[49,256], index: 0, kind: input, shape index: {}]
  %s1 = inlined_call_operand.vmem [shape: f32[1,256], index: 1, kind: input, shape index: {}]
  %s2 = inlined_call_operand.vmem [shape: f32[1,256], index: 2, kind: input, shape index: {}]
  %s3 = inlined_call_operand.hbm [shape: bf16[256,1536], index: 3, kind: input, shape index: {}]
  %s4 = inlined_call_operand.hbm [shape: f32[49,1536], index: 4, kind: output, shape index: {}]
  %s5 = sld [smem:[#allocation0]]
  $region57: #{tpu_custom_call.1} parent=0
    _
  %s7 = ssub.s32 1, %s5
  %s8 = scalar_select 0, %s7, %s5
  $region1: #{tpu_custom_call.1} parent=0
    #allocation2 [shape = 'u8[57344]{0}', space=vmem, size = 0xe000, scoped, tag = 'input window, operand 0, single buffered']
    #allocation3 [shape = 's32[2]{0}', space=sflag, size = 0x8, scoped, tag = 'scoped memory for tpu_custom_call.1']
    #allocation4 [shape = 's32[2]{0}', space=sflag, size = 0x8, scoped, tag = 'scoped memory for tpu_custom_call.1']
    #allocation5 [shape = 'u8[786432]{0}', space=vmem, size = 0xc0000, scoped, tag = 'input window, operand 3']
    #allocation6 [shape = 's32[2]{0}', space=sflag, size = 0x8, scoped, tag = 'scoped memory for tpu_custom_call.1']
    #allocation7 [shape = 'u8[344064]{0}', space=vmem, size = 0x54000, scoped, tag = 'output window, operand 0']
    %9 = vsyncpa [#allocation3], 0
    %10 = vsyncpa [#allocation6], 0
    %s11 = scalar_lea.sflag [#allocation6], 1
    %12 = vsyncpa %s11, 0
    %13 = vsyncpa [#allocation4], 0
    %s14 = scalar_lea.sflag [#allocation4], 1
    %15 = vsyncpa %s14, 0
    loop: start=0, step=1, limit=4
    $region2: #{tpu_custom_call.1} parent=1 // loop_pre_header
      _
    $region3: #{tpu_custom_call.1} parent=1 // loop_header
      %s17 = sphi 0, %s21
      %p18 = scmp.ge.s32.totalorder %s17, 4
      %s25 = sphi 0, %s25
      %s27 = sphi 0, %s25
      %s28 = sphi 0, %s27
      %s42 = sphi 0, %s28
      %s46 = sphi 0, %s46
      %s48 = sphi 0, %s46
      %s49 = sphi 0, %s48
      %s63 = sphi 0, %s49
      %s67 = sphi 0, %s67
      %s69 = sphi 0, %s67
      %s70 = sphi 0, %s69
      %s84 = sphi 0, %s70
      %s90 = sphi 0, %s92
      %s93 = sphi 0, %s90
      %s94 = sphi 0, %s93
      %s110 = sphi 0, %s94
      %s116 = sphi 0, %s118
      %s119 = sphi 0, %s116
      %s120 = sphi 0, %s119
      %s136 = sphi 0, %s120
    $region4: #{tpu_custom_call.1} parent=1 // loop_header_branch
      %20 = sbr.rel (%p18) target = $region8
    $region5: #{tpu_custom_call.1} parent=1 // loop_body
      %s22 = ssub.s32 %s17, 1
      %s23 = ssub.s32 %s17, 2
      %s24 = sadd.s32 %s17, 1
      %s26 = sadd.s32 %s25, 1
      %p29 = scmp.eq.s32.totalorder %s17, 1
      %p30 = scmp.ne.s32.totalorder %s25, %s27
      %p31 = scmp.eq.s32.totalorder %s17, 0
      %p32 = por %p30, %p31
      %p33 = scmp.ne.s32.totalorder %s25, %s27
      %p34 = scmp.eq.s32.totalorder %s22, 1
      %p35 = por %p33, %p34
      %p36 = scmp.ne.s32.totalorder %s27, %s28
      %p37 = scmp.eq.s32.totalorder %s22, 0
      %p38 = por %p36, %p37
      %p39 = scmp.ne.s32.totalorder %s27, %s28
      %p40 = scmp.eq.s32.totalorder %s23, 1
      %p41 = por %p39, %p40
      %p43 = scmp.ne.s32.totalorder %s28, %s42
      %p44 = scmp.eq.s32.totalorder %s23, 0
      %p45 = por %p43, %p44
      %s47 = sadd.s32 %s46, 1
      %p50 = scmp.eq.s32.totalorder %s17, 1
      %p51 = scmp.ne.s32.totalorder %s46, %s48
      %p52 = scmp.eq.s32.totalorder %s17, 0
      %p53 = por %p51, %p52
      %p54 = scmp.ne.s32.totalorder %s46, %s48
      %p55 = scmp.eq.s32.totalorder %s22, 1
      %p56 = por %p54, %p55
      %p57 = scmp.ne.s32.totalorder %s48, %s49
      %p58 = scmp.eq.s32.totalorder %s22, 0
      %p59 = por %p57, %p58
      %p60 = scmp.ne.s32.totalorder %s48, %s49
      %p61 = scmp.eq.s32.totalorder %s23, 1
      %p62 = por %p60, %p61
      %p64 = scmp.ne.s32.totalorder %s49, %s63
      %p65 = scmp.eq.s32.totalorder %s23, 0
      %p66 = por %p64, %p65
      %s68 = sadd.s32 %s67, 1
      %p71 = scmp.eq.s32.totalorder %s17, 1
      %p72 = scmp.ne.s32.totalorder %s67, %s69
      %p73 = scmp.eq.s32.totalorder %s17, 0
      %p74 = por %p72, %p73
      %p75 = scmp.ne.s32.totalorder %s67, %s69
      %p76 = scmp.eq.s32.totalorder %s22, 1
      %p77 = por %p75, %p76
      %p78 = scmp.ne.s32.totalorder %s69, %s70
      %p79 = scmp.eq.s32.totalorder %s22, 0
      %p80 = por %p78, %p79
      %p81 = scmp.ne.s32.totalorder %s69, %s70
      %p82 = scmp.eq.s32.totalorder %s23, 1
      %p83 = por %p81, %p82
      %p85 = scmp.ne.s32.totalorder %s70, %s84
      %p86 = scmp.eq.s32.totalorder %s23, 0
      %p87 = por %p85, %p86
      %s88 = ssub.s32 %s17, %s24
      %p89 = scmp.eq.s32.totalorder %s88, 0
      %s91 = sadd.s32 %s90, 1
      %s92 = scalar_select %p89, %s90, %s91
      %p95 = pneg %p89
      %p96 = scmp.eq.s32.totalorder %s17, 1
      %p97 = por %p95, %p96
      %p98 = scmp.ne.s32.totalorder %s90, %s93
      %p99 = scmp.eq.s32.totalorder %s17, 0
      %p100 = por %p98, %p99
      %p101 = scmp.ne.s32.totalorder %s90, %s93
      %p102 = scmp.eq.s32.totalorder %s22, 1
      %p103 = por %p101, %p102
      %p104 = scmp.ne.s32.totalorder %s93, %s94
      %p105 = scmp.eq.s32.totalorder %s22, 0
      %p106 = por %p104, %p105
      %p107 = scmp.ne.s32.totalorder %s93, %s94
      %p108 = scmp.eq.s32.totalorder %s23, 1
      %p109 = por %p107, %p108
      %p111 = scmp.ne.s32.totalorder %s94, %s110
      %p112 = scmp.eq.s32.totalorder %s23, 0
      %p113 = por %p111, %p112
      %s114 = ssub.s32 %s17, %s24
      %p115 = scmp.eq.s32.totalorder %s114, 0
      %s117 = sadd.s32 %s116, 1
      %s118 = scalar_select %p115, %s116, %s117
      %p121 = pneg %p115
      %p122 = scmp.eq.s32.totalorder %s17, 1
      %p123 = por %p121, %p122
      %p124 = scmp.ne.s32.totalorder %s116, %s119
      %p125 = scmp.eq.s32.totalorder %s17, 0
      %p126 = por %p124, %p125
      %p127 = scmp.ne.s32.totalorder %s116, %s119
      %p128 = scmp.eq.s32.totalorder %s22, 1
      %p129 = por %p127, %p128
      %p130 = scmp.ne.s32.totalorder %s119, %s120
      %p131 = scmp.eq.s32.totalorder %s22, 0
      %p132 = por %p130, %p131
      %p133 = scmp.ne.s32.totalorder %s119, %s120
      %p134 = scmp.eq.s32.totalorder %s23, 1
      %p135 = por %p133, %p134
      %p137 = scmp.ne.s32.totalorder %s120, %s136
      %p138 = scmp.eq.s32.totalorder %s23, 0
      %p139 = por %p137, %p138
      %p140 = scmp.le.s32.totalorder 1, %s17
      %p141 = scmp.lt.s32.totalorder %s17, 3
      %p142 = pnand %p140, %p141
      %p143 = pneg %p142
      // Predicated region
      $region9: #{tpu_custom_call.1} parent=5 // pred_check
        _
      $region10: #{tpu_custom_call.1} parent=5 // pred_check_branch
        %145 = sbr.rel (%p142) target = $region12
      $region11: #{tpu_custom_call.1} parent=5 // pred_region
        %s146 = ssub.s32 %s17, 1
        // Predicated region
        $region13: #{tpu_custom_call.1} parent=11 // pred_check
          %p147 = pneg %p38
        $region14: #{tpu_custom_call.1} parent=11 // pred_check_branch
          %149 = sbr.rel (%p147) target = $region16
        $region15: #{tpu_custom_call.1} parent=11 // pred_region
          %s151 = ssub.s32 1792, 1792
          %152 = vsyncadd [#allocation3], %s151
          %s153 = sshll.u32 [#allocation2], 4
          %s154 = int_to_ptr.vmem [resolvable:$true] %s153
          %159 = dma.hbm_to_vmem [thread:$0]  %s0, 1792, %s154, [#allocation3], 256, 256, 16
        $region16: #{tpu_custom_call.1} parent=11 // pred_fallthru
          _
        // Predicated region
        $region17: #{tpu_custom_call.1} parent=11 // pred_check
          %p160 = pneg %p59
        $region18: #{tpu_custom_call.1} parent=11 // pred_check_branch
          %162 = sbr.rel (%p160) target = $region20
        $region19: #{tpu_custom_call.1} parent=11 // pred_region
          _
        $region20: #{tpu_custom_call.1} parent=11 // pred_fallthru
          _
        // Predicated region
        $region21: #{tpu_custom_call.1} parent=11 // pred_check
          %p163 = pneg %p80
        $region22: #{tpu_custom_call.1} parent=11 // pred_check_branch
          %165 = sbr.rel (%p163) target = $region24
        $region23: #{tpu_custom_call.1} parent=11 // pred_region
          _
        $region24: #{tpu_custom_call.1} parent=11 // pred_fallthru
          _
      $region12: #{tpu_custom_call.1} parent=5 // pred_fallthru
        _
      %p166 = scmp.lt.s32.totalorder %s17, 2
      // Predicated region
      $region25: #{tpu_custom_call.1} parent=5 // pred_check
        %p167 = pneg %p166
      $region26: #{tpu_custom_call.1} parent=5 // pred_check_branch
        %169 = sbr.rel (%p167) target = $region28
      $region27: #{tpu_custom_call.1} parent=5 // pred_region
        // Predicated region
        $region29: #{tpu_custom_call.1} parent=27 // pred_check
          %p170 = pneg %p100
        $region30: #{tpu_custom_call.1} parent=27 // pred_check_branch
          %172 = sbr.rel (%p170) target = $region32
        $region31: #{tpu_custom_call.1} parent=27 // pred_region
          %s173 = sand.u32 %s90, 1
          %s174 = scalar_lea.sflag [#allocation6], %s173
          %s175 = sand.u32 %s90, 1
          %s176 = smul.addr %s175, 768
          %s177 = scalar_lea.vmem [#allocation5], %s176
          %s178 = smul.u32 6, %s17
          %s180 = ssub.s32 12288, 12288
          %181 = vsyncadd %s174, %s180
          %s182 = smul.addr %s178, 64
          %s183 = scalar_lea.hbm %s3, %s182
          %s184 = sshll.u32 %s177, 4
          %s185 = int_to_ptr.vmem [resolvable:$true] %s184
          %190 = dma.hbm_to_vmem [thread:$0]  %s183, 12288, %s185, %s174, 768, 384, 24
        $region32: #{tpu_custom_call.1} parent=27 // pred_fallthru
          _
      $region28: #{tpu_custom_call.1} parent=5 // pred_fallthru
        _
      %p191 = scmp.le.s32.totalorder 1, %s17
      %p192 = scmp.lt.s32.totalorder %s17, 3
      %p193 = pnand %p191, %p192
      %p194 = pneg %p193
      // Predicated region
      $region33: #{tpu_custom_call.1} parent=5 // pred_check
        _
      $region34: #{tpu_custom_call.1} parent=5 // pred_check_branch
        %196 = sbr.rel (%p193) target = $region36
      $region35: #{tpu_custom_call.1} parent=5 // pred_region
        %s197 = ssub.s32 %s17, 1
        // Predicated region
        $region37: #{tpu_custom_call.1} parent=35 // pred_check
          %p198 = pneg %p38
        $region38: #{tpu_custom_call.1} parent=35 // pred_check_branch
          %200 = sbr.rel (%p198) target = $region40
        $region39: #{tpu_custom_call.1} parent=35 // pred_region
          %201 = dma.done [#allocation3], 1792
        $region40: #{tpu_custom_call.1} parent=35 // pred_fallthru
          _
        %s202 = sand.u32 %s93, 1
        %s203 = scalar_lea.sflag [#allocation6], %s202
        %s204 = sand.u32 %s93, 1
        %s205 = smul.addr %s204, 768
        %s206 = scalar_lea.vmem [#allocation5], %s205
        // Predicated region
        $region41: #{tpu_custom_call.1} parent=35 // pred_check
          %p207 = pneg %p106
        $region42: #{tpu_custom_call.1} parent=35 // pred_check_branch
          %209 = sbr.rel (%p207) target = $region44
        $region43: #{tpu_custom_call.1} parent=35 // pred_region
          %210 = dma.done %s203, 12288
        $region44: #{tpu_custom_call.1} parent=35 // pred_fallthru
          _
        %p211 = pneg %p38
        %p212 = pneg %p35
        %p213 = pneg %p59
        %p214 = pneg %p56
        %p215 = pneg %p80
        %p216 = pneg %p77
        %s217 = sand.u32 %s93, 1
        %s218 = scalar_lea.sflag [#allocation6], %s217
        %s219 = sand.u32 %s93, 1
        %s220 = smul.addr %s219, 768
        %s221 = scalar_lea.vmem [#allocation5], %s220
        %p222 = pneg %p106
        %p223 = pneg %p103
        %p224 = pneg %p132
        %p225 = pneg %p129
        %s226 = sand.u32 %s119, 1
        %s227 = scalar_lea.sflag [#allocation4], %s226
        %s228 = sand.u32 %s119, 1
        %s229 = smul.addr %s228, 336
        %s230 = scalar_lea.vmem [#allocation7], %s229
        %s231 = smul.u32 6, %s22
        %s232 = smul.u32 6, %s22
        %v233 = vld [vmem:[#allocation2] sm:$0xff]
        %v234 = vld [vmem:[#allocation2 + $0x8] sm:$0xff]
        %v235 = vld [vmem:[#allocation2 + $0x10] sm:$0xff]
        %v236 = vld [vmem:[#allocation2 + $0x18] sm:$0xff]
        %v237 = vld [vmem:[#allocation2 + $0x20] sm:$0xff]
        %v238 = vld [vmem:[#allocation2 + $0x28] sm:$0xff]
        %v239 = vld [vmem:[#allocation2 + $0x30] sm:$0xff]
        %v240 = vld [vmem:[#allocation2 + $0x38] sm:$0xff]
        %v241 = vld [vmem:[#allocation2 + $0x40] sm:$0xff]
        %v242 = vld [vmem:[#allocation2 + $0x48] sm:$0xff]
        %v243 = vld [vmem:[#allocation2 + $0x50] sm:$0xff]
        %v244 = vld [vmem:[#allocation2 + $0x58] sm:$0xff]
        %v245 = vld [vmem:[#allocation2 + $0x60] sm:$0x1]
        %v246 = vld [vmem:[#allocation2 + $0x68] sm:$0x1]
        %v247 = vadd.f32 %v233, %v235
        %v248 = vadd.f32 %v247, %v237
        %v249 = vadd.f32 %v248, %v239
        %v250 = vadd.f32 %v249, %v241
        %v251 = vadd.f32 %v250, %v243
        %vm252 = vcmask 1040384
        %v253 = vsel %vm252, %v245, 0.0
        %v254 = vadd.f32 %v251, %v253
        %v255 = vrot.slane %v254, 4
        %v256 = vadd.f32 %v254, %v255
        %v257 = vrot.slane %v256, 2
        %v258 = vadd.f32 %v256, %v257
        %v259 = vrot.slane %v258, 1
        %v260 = vadd.f32 %v258, %v259
        %v261 = vadd.f32 %v234, %v236
        %v262 = vadd.f32 %v261, %v238
        %v263 = vadd.f32 %v262, %v240
        %v264 = vadd.f32 %v263, %v242
        %v265 = vadd.f32 %v264, %v244
        %v266 = vsel %vm252, %v246, 0.0
        %v267 = vadd.f32 %v265, %v266
        %v268 = vrot.slane %v267, 4
        %v269 = vadd.f32 %v267, %v268
        %v270 = vrot.slane %v269, 2
        %v271 = vadd.f32 %v269, %v270
        %v272 = vrot.slane %v271, 1
        %v273 = vadd.f32 %v271, %v272
        %v274 = vrcp.pop 49.0
        %v275 = vmul.f32 %v260, %v274
        %v276 = vmul.f32 %v273, %v274
        %v277 = vsub.f32 %v233, %v275
        %v278 = vsub.f32 %v234, %v276
        %v279 = vsub.f32 %v235, %v275
        %v280 = vsub.f32 %v236, %v276
        %v281 = vsub.f32 %v237, %v275
        %v282 = vsub.f32 %v238, %v276
        %v283 = vsub.f32 %v239, %v275
        %v284 = vsub.f32 %v240, %v276
        %v285 = vsub.f32 %v241, %v275
        %v286 = vsub.f32 %v242, %v276
        %v287 = vsub.f32 %v243, %v275
        %v288 = vsub.f32 %v244, %v276
        %v289 = vsub.f32 %v245, %v275
        %v290 = vsub.f32 %v246, %v276
        %v291 = vmul.f32 %v277, %v277
        %v292 = vmul.f32 %v278, %v278
        %v293 = vmul.f32 %v279, %v279
        %v294 = vmul.f32 %v280, %v280
        %v295 = vmul.f32 %v281, %v281
        %v296 = vmul.f32 %v282, %v282
        %v297 = vmul.f32 %v283, %v283
        %v298 = vmul.f32 %v284, %v284
        %v299 = vmul.f32 %v285, %v285
        %v300 = vmul.f32 %v286, %v286
        %v301 = vmul.f32 %v287, %v287
        %v302 = vmul.f32 %v288, %v288
        %v303 = vmul.f32 %v289, %v289
        %v304 = vmul.f32 %v290, %v290
        %v305 = vadd.f32 %v291, %v293
        %v306 = vadd.f32 %v305, %v295
        %v307 = vadd.f32 %v306, %v297
        %v308 = vadd.f32 %v307, %v299
        %v309 = vadd.f32 %v308, %v301
        %v310 = vsel %vm252, %v303, 0.0
        %v311 = vadd.f32 %v309, %v310
        %v312 = vrot.slane %v311, 4
        %v313 = vadd.f32 %v311, %v312
        %v314 = vrot.slane %v313, 2
        %v315 = vadd.f32 %v313, %v314
        %v316 = vrot.slane %v315, 1
        %v317 = vadd.f32 %v315, %v316
        %v318 = vadd.f32 %v292, %v294
        %v319 = vadd.f32 %v318, %v296
        %v320 = vadd.f32 %v319, %v298
        %v321 = vadd.f32 %v320, %v300
        %v322 = vadd.f32 %v321, %v302
        %v323 = vsel %vm252, %v304, 0.0
        %v324 = vadd.f32 %v322, %v323
        %v325 = vrot.slane %v324, 4
        %v326 = vadd.f32 %v324, %v325
        %v327 = vrot.slane %v326, 2
        %v328 = vadd.f32 %v326, %v327
        %v329 = vrot.slane %v328, 1
        %v330 = vadd.f32 %v328, %v329
        %v331 = vmul.f32 %v317, %v274
        %v332 = vmul.f32 %v330, %v274
        %v333 = vld [vmem:[%s1] sm:$0x3]
        %v334 = vadd.f32 %v331, 0.001
        %v335 = vadd.f32 %v332, 0.001
        %v336 = vrsqrt.pop %v334
        %v337 = vrsqrt.pop %v335
        %v340 = vcombine.low %v336, %v337
        %v342 = vunpack.c.l.s4 1966171168
        %v343 = vunpack.c.0.s8 %v342
        %v344 = vlaneseq
        %v345 = vshrl.u32 %v344, 7
        %v346 = vsub.s32 %v343, %v345
        %v347 = vrot.slane %v340, %v346
        %v349 = vunpack.c.l.s4 1966171168
        %v350 = vunpack.c.0.s8 %v349
        %v351 = vlaneseq
        %v352 = vshrl.u32 %v351, 7
        %v353 = vsub.s32 %v350, %v352
        %v354 = vrot.slane %v347, %v353
        %v356 = vmul.f32 %v333, %v354
        %v358 = vlaneseq
        %v359 = vshrl.u32 %v358, 7
        %v360 = vsub.s32 0, %v359
        %v361 = vrot.slane %v356, %v360
        %v362 = vlaneseq
        %v363 = vshrl.u32 %v362, 7
        %v364 = vsub.s32 1, %v363
        %v365 = vrot.slane %v356, %v364
        %v368 = vmul.f32 %v277, %v361
        %v369 = vmul.f32 %v278, %v365
        %v370 = vmul.f32 %v279, %v361
        %v371 = vmul.f32 %v280, %v365
        %v372 = vmul.f32 %v281, %v361
        %v373 = vmul.f32 %v282, %v365
        %v374 = vmul.f32 %v283, %v361
        %v375 = vmul.f32 %v284, %v365
        %v376 = vmul.f32 %v285, %v361
        %v377 = vmul.f32 %v286, %v365
        %v378 = vmul.f32 %v287, %v361
        %v379 = vmul.f32 %v288, %v365
        %v380 = vmul.f32 %v289, %v361
        %v381 = vmul.f32 %v290, %v365
        %v382 = vld [vmem:[%s2] sm:$0x3]
        %v384 = vlaneseq
        %v385 = vshrl.u32 %v384, 7
        %v386 = vsub.s32 0, %v385
        %v387 = vrot.slane %v382, %v386
        %v388 = vlaneseq
        %v389 = vshrl.u32 %v388, 7
        %v390 = vsub.s32 1, %v389
        %v391 = vrot.slane %v382, %v390
        %v394 = vadd.f32 %v368, %v387
        %v395 = vadd.f32 %v369, %v391
        %v396 = vadd.f32 %v370, %v387
        %v397 = vadd.f32 %v371, %v391
        %v398 = vadd.f32 %v372, %v387
        %v399 = vadd.f32 %v373, %v391
        %v400 = vadd.f32 %v374, %v387
        %v401 = vadd.f32 %v375, %v391
        %v402 = vadd.f32 %v376, %v387
        %v403 = vadd.f32 %v377, %v391
        %v404 = vadd.f32 %v378, %v387
        %v405 = vadd.f32 %v379, %v391
        %v406 = vadd.f32 %v380, %v387
        %v407 = vadd.f32 %v381, %v391
        %v408 = vpack.c.bf16 %v396, %v394
        %v409 = vpack.c.bf16 %v397, %v395
        %v410 = vpack.c.bf16 %v400, %v398
        %v411 = vpack.c.bf16 %v401, %v399
        %v412 = vpack.c.bf16 %v404, %v402
        %v413 = vpack.c.bf16 %v405, %v403
        %v414 = vpack.c.bf16 %v406, %v406
        %v415 = vpack.c.bf16 %v407, %v407
        %v416 = vld [vmem:[%s206] sm:$0xff]
        %v417 = vld [vmem:[%s206 + $0x8] sm:$0xff]
        %v418 = vld [vmem:[%s206 + $0x10] sm:$0xff]
        %v419 = vld [vmem:[%s206 + $0x18] sm:$0xff]
        %v420 = vld [vmem:[%s206 + $0x20] sm:$0xff]
        %v421 = vld [vmem:[%s206 + $0x28] sm:$0xff]
        %v422 = vld [vmem:[%s206 + $0x30] sm:$0xff]
        %v423 = vld [vmem:[%s206 + $0x38] sm:$0xff]
        %v424 = vld [vmem:[%s206 + $0x40] sm:$0xff]
        %v425 = vld [vmem:[%s206 + $0x48] sm:$0xff]
        %v426 = vld [vmem:[%s206 + $0x50] sm:$0xff]
        %v427 = vld [vmem:[%s206 + $0x58] sm:$0xff]
        %v428 = vld [vmem:[%s206 + $0x60] sm:$0xff]
        %v429 = vld [vmem:[%s206 + $0x68] sm:$0xff]
        %v430 = vld [vmem:[%s206 + $0x70] sm:$0xff]
        %v431 = vld [vmem:[%s206 + $0x78] sm:$0xff]
        %v432 = vld [vmem:[%s206 + $0x80] sm:$0xff]
        %v433 = vld [vmem:[%s206 + $0x88] sm:$0xff]
        %v434 = vld [vmem:[%s206 + $0x90] sm:$0xff]
        %v435 = vld [vmem:[%s206 + $0x98] sm:$0xff]
        %v436 = vld [vmem:[%s206 + $0xa0] sm:$0xff]
        %v437 = vld [vmem:[%s206 + $0xa8] sm:$0xff]
        %v438 = vld [vmem:[%s206 + $0xb0] sm:$0xff]
        %v439 = vld [vmem:[%s206 + $0xb8] sm:$0xff]
        %v440 = vld [vmem:[%s206 + $0xc0] sm:$0xff]
        %v441 = vld [vmem:[%s206 + $0xc8] sm:$0xff]
        %v442 = vld [vmem:[%s206 + $0xd0] sm:$0xff]
        %v443 = vld [vmem:[%s206 + $0xd8] sm:$0xff]
        %v444 = vld [vmem:[%s206 + $0xe0] sm:$0xff]
        %v445 = vld [vmem:[%s206 + $0xe8] sm:$0xff]
        %v446 = vld [vmem:[%s206 + $0xf0] sm:$0xff]
        %v447 = vld [vmem:[%s206 + $0xf8] sm:$0xff]
        %v448 = vld [vmem:[%s206 + $0x100] sm:$0xff]
        %v449 = vld [vmem:[%s206 + $0x108] sm:$0xff]
        %v450 = vld [vmem:[%s206 + $0x110] sm:$0xff]
        %v451 = vld [vmem:[%s206 + $0x118] sm:$0xff]
        %v452 = vld [vmem:[%s206 + $0x120] sm:$0xff]
        %v453 = vld [vmem:[%s206 + $0x128] sm:$0xff]
        %v454 = vld [vmem:[%s206 + $0x130] sm:$0xff]
        %v455 = vld [vmem:[%s206 + $0x138] sm:$0xff]
        %v456 = vld [vmem:[%s206 + $0x140] sm:$0xff]
        %v457 = vld [vmem:[%s206 + $0x148] sm:$0xff]
        %v458 = vld [vmem:[%s206 + $0x150] sm:$0xff]
        %v459 = vld [vmem:[%s206 + $0x158] sm:$0xff]
        %v460 = vld [vmem:[%s206 + $0x160] sm:$0xff]
        %v461 = vld [vmem:[%s206 + $0x168] sm:$0xff]
        %v462 = vld [vmem:[%s206 + $0x170] sm:$0xff]
        %v463 = vld [vmem:[%s206 + $0x178] sm:$0xff]
        %v464 = vld [vmem:[%s206 + $0x180] sm:$0xff]
        %v465 = vld [vmem:[%s206 + $0x188] sm:$0xff]
        %v466 = vld [vmem:[%s206 + $0x190] sm:$0xff]
        %v467 = vld [vmem:[%s206 + $0x198] sm:$0xff]
        %v468 = vld [vmem:[%s206 + $0x1a0] sm:$0xff]
        %v469 = vld [vmem:[%s206 + $0x1a8] sm:$0xff]
        %v470 = vld [vmem:[%s206 + $0x1b0] sm:$0xff]
        %v471 = vld [vmem:[%s206 + $0x1b8] sm:$0xff]
        %v472 = vld [vmem:[%s206 + $0x1c0] sm:$0xff]
        %v473 = vld [vmem:[%s206 + $0x1c8] sm:$0xff]
        %v474 = vld [vmem:[%s206 + $0x1d0] sm:$0xff]
        %v475 = vld [vmem:[%s206 + $0x1d8] sm:$0xff]
        %v476 = vld [vmem:[%s206 + $0x1e0] sm:$0xff]
        %v477 = vld [vmem:[%s206 + $0x1e8] sm:$0xff]
        %v478 = vld [vmem:[%s206 + $0x1f0] sm:$0xff]
        %v479 = vld [vmem:[%s206 + $0x1f8] sm:$0xff]
        %v480 = vld [vmem:[%s206 + $0x200] sm:$0xff]
        %v481 = vld [vmem:[%s206 + $0x208] sm:$0xff]
        %v482 = vld [vmem:[%s206 + $0x210] sm:$0xff]
        %v483 = vld [vmem:[%s206 + $0x218] sm:$0xff]
        %v484 = vld [vmem:[%s206 + $0x220] sm:$0xff]
        %v485 = vld [vmem:[%s206 + $0x228] sm:$0xff]
        %v486 = vld [vmem:[%s206 + $0x230] sm:$0xff]
        %v487 = vld [vmem:[%s206 + $0x238] sm:$0xff]
        %v488 = vld [vmem:[%s206 + $0x240] sm:$0xff]
        %v489 = vld [vmem:[%s206 + $0x248] sm:$0xff]
        %v490 = vld [vmem:[%s206 + $0x250] sm:$0xff]
        %v491 = vld [vmem:[%s206 + $0x258] sm:$0xff]
        %v492 = vld [vmem:[%s206 + $0x260] sm:$0xff]
        %v493 = vld [vmem:[%s206 + $0x268] sm:$0xff]
        %v494 = vld [vmem:[%s206 + $0x270] sm:$0xff]
        %v495 = vld [vmem:[%s206 + $0x278] sm:$0xff]
        %v496 = vld [vmem:[%s206 + $0x280] sm:$0xff]
        %v497 = vld [vmem:[%s206 + $0x288] sm:$0xff]
        %v498 = vld [vmem:[%s206 + $0x290] sm:$0xff]
        %v499 = vld [vmem:[%s206 + $0x298] sm:$0xff]
        %v500 = vld [vmem:[%s206 + $0x2a0] sm:$0xff]
        %v501 = vld [vmem:[%s206 + $0x2a8] sm:$0xff]
        %v502 = vld [vmem:[%s206 + $0x2b0] sm:$0xff]
        %v503 = vld [vmem:[%s206 + $0x2b8] sm:$0xff]
        %v504 = vld [vmem:[%s206 + $0x2c0] sm:$0xff]
        %v505 = vld [vmem:[%s206 + $0x2c8] sm:$0xff]
        %v506 = vld [vmem:[%s206 + $0x2d0] sm:$0xff]
        %v507 = vld [vmem:[%s206 + $0x2d8] sm:$0xff]
        %v508 = vld [vmem:[%s206 + $0x2e0] sm:$0xff]
        %v509 = vld [vmem:[%s206 + $0x2e8] sm:$0xff]
        %v510 = vld [vmem:[%s206 + $0x2f0] sm:$0xff]
        %v511 = vld [vmem:[%s206 + $0x2f8] sm:$0xff]
        %v608 = vunpack.c.l.b16 %v416
        %v609 = vunpack.c.h.b16 %v416
        %v610 = vunpack.c.l.b16 %v417
        %v611 = vunpack.c.h.b16 %v417
        %v612 = vunpack.c.l.b16 %v418
        %v613 = vunpack.c.h.b16 %v418
        %v614 = vunpack.c.l.b16 %v419
        %v615 = vunpack.c.h.b16 %v419
        %v616 = vunpack.c.l.b16 %v420
        %v617 = vunpack.c.h.b16 %v420
        %v618 = vunpack.c.l.b16 %v421
        %v619 = vunpack.c.h.b16 %v421
        %v620 = vunpack.c.l.b16 %v422
        %v621 = vunpack.c.h.b16 %v422
        %v622 = vunpack.c.l.b16 %v423
        %v623 = vunpack.c.h.b16 %v423
        %v624 = vunpack.c.l.b16 %v424
        %v625 = vunpack.c.h.b16 %v424
        %v626 = vunpack.c.l.b16 %v425
        %v627 = vunpack.c.h.b16 %v425
        %v628 = vunpack.c.l.b16 %v426
        %v629 = vunpack.c.h.b16 %v426
        %v630 = vunpack.c.l.b16 %v427
        %v631 = vunpack.c.h.b16 %v427
        %v632 = vunpack.c.l.b16 %v428
        %v633 = vunpack.c.h.b16 %v428
        %v634 = vunpack.c.l.b16 %v429
        %v635 = vunpack.c.h.b16 %v429
        %v636 = vunpack.c.l.b16 %v430
        %v637 = vunpack.c.h.b16 %v430
        %v638 = vunpack.c.l.b16 %v431
        %v639 = vunpack.c.h.b16 %v431
        %v640 = vunpack.c.l.b16 %v432
        %v641 = vunpack.c.h.b16 %v432
        %v642 = vunpack.c.l.b16 %v433
        %v643 = vunpack.c.h.b16 %v433
        %v644 = vunpack.c.l.b16 %v434
        %v645 = vunpack.c.h.b16 %v434
        %v646 = vunpack.c.l.b16 %v435
        %v647 = vunpack.c.h.b16 %v435
        %v648 = vunpack.c.l.b16 %v436
        %v649 = vunpack.c.h.b16 %v436
        %v650 = vunpack.c.l.b16 %v437
        %v651 = vunpack.c.h.b16 %v437
        %v652 = vunpack.c.l.b16 %v438
        %v653 = vunpack.c.h.b16 %v438
        %v654 = vunpack.c.l.b16 %v439
        %v655 = vunpack.c.h.b16 %v439
        %v656 = vunpack.c.l.b16 %v440
        %v657 = vunpack.c.h.b16 %v440
        %v658 = vunpack.c.l.b16 %v441
        %v659 = vunpack.c.h.b16 %v441
        %v660 = vunpack.c.l.b16 %v442
        %v661 = vunpack.c.h.b16 %v442
        %v662 = vunpack.c.l.b16 %v443
        %v663 = vunpack.c.h.b16 %v443
        %v664 = vunpack.c.l.b16 %v444
        %v665 = vunpack.c.h.b16 %v444
        %v666 = vunpack.c.l.b16 %v445
        %v667 = vunpack.c.h.b16 %v445
        %v668 = vunpack.c.l.b16 %v446
        %v669 = vunpack.c.h.b16 %v446
        %v670 = vunpack.c.l.b16 %v447
        %v671 = vunpack.c.h.b16 %v447
        %v672 = vunpack.c.l.b16 %v448
        %v673 = vunpack.c.h.b16 %v448
        %v674 = vunpack.c.l.b16 %v449
        %v675 = vunpack.c.h.b16 %v449
        %v676 = vunpack.c.l.b16 %v450
        %v677 = vunpack.c.h.b16 %v450
        %v678 = vunpack.c.l.b16 %v451
        %v679 = vunpack.c.h.b16 %v451
        %v680 = vunpack.c.l.b16 %v452
        %v681 = vunpack.c.h.b16 %v452
        %v682 = vunpack.c.l.b16 %v453
        %v683 = vunpack.c.h.b16 %v453
        %v684 = vunpack.c.l.b16 %v454
        %v685 = vunpack.c.h.b16 %v454
        %v686 = vunpack.c.l.b16 %v455
        %v687 = vunpack.c.h.b16 %v455
        %v688 = vunpack.c.l.b16 %v456
        %v689 = vunpack.c.h.b16 %v456
        %v690 = vunpack.c.l.b16 %v457
        %v691 = vunpack.c.h.b16 %v457
        %v692 = vunpack.c.l.b16 %v458
        %v693 = vunpack.c.h.b16 %v458
        %v694 = vunpack.c.l.b16 %v459
        %v695 = vunpack.c.h.b16 %v459
        %v696 = vunpack.c.l.b16 %v460
        %v697 = vunpack.c.h.b16 %v460
        %v698 = vunpack.c.l.b16 %v461
        %v699 = vunpack.c.h.b16 %v461
        %v700 = vunpack.c.l.b16 %v462
        %v701 = vunpack.c.h.b16 %v462
        %v702 = vunpack.c.l.b16 %v463
        %v703 = vunpack.c.h.b16 %v463
        %v704 = vunpack.c.l.b16 %v464
        %v705 = vunpack.c.h.b16 %v464
        %v706 = vunpack.c.l.b16 %v465
        %v707 = vunpack.c.h.b16 %v465
        %v708 = vunpack.c.l.b16 %v466
        %v709 = vunpack.c.h.b16 %v466
        %v710 = vunpack.c.l.b16 %v467
        %v711 = vunpack.c.h.b16 %v467
        %v712 = vunpack.c.l.b16 %v468
        %v713 = vunpack.c.h.b16 %v468
        %v714 = vunpack.c.l.b16 %v469
        %v715 = vunpack.c.h.b16 %v469
        %v716 = vunpack.c.l.b16 %v470
        %v717 = vunpack.c.h.b16 %v470
        %v718 = vunpack.c.l.b16 %v471
        %v719 = vunpack.c.h.b16 %v471
        %v720 = vunpack.c.l.b16 %v472
        %v721 = vunpack.c.h.b16 %v472
        %v722 = vunpack.c.l.b16 %v473
        %v723 = vunpack.c.h.b16 %v473
        %v724 = vunpack.c.l.b16 %v474
        %v725 = vunpack.c.h.b16 %v474
        %v726 = vunpack.c.l.b16 %v475
        %v727 = vunpack.c.h.b16 %v475
        %v728 = vunpack.c.l.b16 %v476
        %v729 = vunpack.c.h.b16 %v476
        %v730 = vunpack.c.l.b16 %v477
        %v731 = vunpack.c.h.b16 %v477
        %v732 = vunpack.c.l.b16 %v478
        %v733 = vunpack.c.h.b16 %v478
        %v734 = vunpack.c.l.b16 %v479
        %v735 = vunpack.c.h.b16 %v479
        %v736 = vunpack.c.l.b16 %v480
        %v737 = vunpack.c.h.b16 %v480
        %v738 = vunpack.c.l.b16 %v481
        %v739 = vunpack.c.h.b16 %v481
        %v740 = vunpack.c.l.b16 %v482
        %v741 = vunpack.c.h.b16 %v482
        %v742 = vunpack.c.l.b16 %v483
        %v743 = vunpack.c.h.b16 %v483
        %v744 = vunpack.c.l.b16 %v484
        %v745 = vunpack.c.h.b16 %v484
        %v746 = vunpack.c.l.b16 %v485
        %v747 = vunpack.c.h.b16 %v485
        %v748 = vunpack.c.l.b16 %v486
        %v749 = vunpack.c.h.b16 %v486
        %v750 = vunpack.c.l.b16 %v487
        %v751 = vunpack.c.h.b16 %v487
        %v752 = vunpack.c.l.b16 %v488
        %v753 = vunpack.c.h.b16 %v488
        %v754 = vunpack.c.l.b16 %v489
        %v755 = vunpack.c.h.b16 %v489
        %v756 = vunpack.c.l.b16 %v490
        %v757 = vunpack.c.h.b16 %v490
        %v758 = vunpack.c.l.b16 %v491
        %v759 = vunpack.c.h.b16 %v491
        %v760 = vunpack.c.l.b16 %v492
        %v761 = vunpack.c.h.b16 %v492
        %v762 = vunpack.c.l.b16 %v493
        %v763 = vunpack.c.h.b16 %v493
        %v764 = vunpack.c.l.b16 %v494
        %v765 = vunpack.c.h.b16 %v494
        %v766 = vunpack.c.l.b16 %v495
        %v767 = vunpack.c.h.b16 %v495
        %v768 = vunpack.c.l.b16 %v496
        %v769 = vunpack.c.h.b16 %v496
        %v770 = vunpack.c.l.b16 %v497
        %v771 = vunpack.c.h.b16 %v497
        %v772 = vunpack.c.l.b16 %v498
        %v773 = vunpack.c.h.b16 %v498
        %v774 = vunpack.c.l.b16 %v499
        %v775 = vunpack.c.h.b16 %v499
        %v776 = vunpack.c.l.b16 %v500
        %v777 = vunpack.c.h.b16 %v500
        %v778 = vunpack.c.l.b16 %v501
        %v779 = vunpack.c.h.b16 %v501
        %v780 = vunpack.c.l.b16 %v502
        %v781 = vunpack.c.h.b16 %v502
        %v782 = vunpack.c.l.b16 %v503
        %v783 = vunpack.c.h.b16 %v503
        %v784 = vunpack.c.l.b16 %v504
        %v785 = vunpack.c.h.b16 %v504
        %v786 = vunpack.c.l.b16 %v505
        %v787 = vunpack.c.h.b16 %v505
        %v788 = vunpack.c.l.b16 %v506
        %v789 = vunpack.c.h.b16 %v506
        %v790 = vunpack.c.l.b16 %v507
        %v791 = vunpack.c.h.b16 %v507
        %v792 = vunpack.c.l.b16 %v508
        %v793 = vunpack.c.h.b16 %v508
        %v794 = vunpack.c.l.b16 %v509
        %v795 = vunpack.c.h.b16 %v509
        %v796 = vunpack.c.l.b16 %v510
        %v797 = vunpack.c.h.b16 %v510
        %v798 = vunpack.c.l.b16 %v511
        %v799 = vunpack.c.h.b16 %v511
        %v800 = vpack.c.b16 %v614, %v608
        %v801 = vpack.c.b16 %v615, %v609
        %v802 = vpack.c.b16 %v616, %v610
        %v803 = vpack.c.b16 %v617, %v611
        %v804 = vpack.c.b16 %v618, %v612
        %v805 = vpack.c.b16 %v619, %v613
        %v806 = vpack.c.b16 %v626, %v620
        %v807 = vpack.c.b16 %v627, %v621
        %v808 = vpack.c.b16 %v628, %v622
        %v809 = vpack.c.b16 %v629, %v623
        %v810 = vpack.c.b16 %v630, %v624
        %v811 = vpack.c.b16 %v631, %v625
        %v812 = vpack.c.b16 %v638, %v632
        %v813 = vpack.c.b16 %v639, %v633
        %v814 = vpack.c.b16 %v640, %v634
        %v815 = vpack.c.b16 %v641, %v635
        %v816 = vpack.c.b16 %v642, %v636
        %v817 = vpack.c.b16 %v643, %v637
        %v818 = vpack.c.b16 %v650, %v644
        %v819 = vpack.c.b16 %v651, %v645
        %v820 = vpack.c.b16 %v652, %v646
        %v821 = vpack.c.b16 %v653, %v647
        %v822 = vpack.c.b16 %v654, %v648
        %v823 = vpack.c.b16 %v655, %v649
        %v824 = vpack.c.b16 %v662, %v656
        %v825 = vpack.c.b16 %v663, %v657
        %v826 = vpack.c.b16 %v664, %v658
        %v827 = vpack.c.b16 %v665, %v659
        %v828 = vpack.c.b16 %v666, %v660
        %v829 = vpack.c.b16 %v667, %v661
        %v830 = vpack.c.b16 %v674, %v668
        %v831 = vpack.c.b16 %v675, %v669
        %v832 = vpack.c.b16 %v676, %v670
        %v833 = vpack.c.b16 %v677, %v671
        %v834 = vpack.c.b16 %v678, %v672
        %v835 = vpack.c.b16 %v679, %v673
        %v836 = vpack.c.b16 %v686, %v680
        %v837 = vpack.c.b16 %v687, %v681
        %v838 = vpack.c.b16 %v688, %v682
        %v839 = vpack.c.b16 %v689, %v683
        %v840 = vpack.c.b16 %v690, %v684
        %v841 = vpack.c.b16 %v691, %v685
        %v842 = vpack.c.b16 %v698, %v692
        %v843 = vpack.c.b16 %v699, %v693
        %v844 = vpack.c.b16 %v700, %v694
        %v845 = vpack.c.b16 %v701, %v695
        %v846 = vpack.c.b16 %v702, %v696
        %v847 = vpack.c.b16 %v703, %v697
        %v848 = vpack.c.b16 %v710, %v704
        %v849 = vpack.c.b16 %v711, %v705
        %v850 = vpack.c.b16 %v712, %v706
        %v851 = vpack.c.b16 %v713, %v707
        %v852 = vpack.c.b16 %v714, %v708
        %v853 = vpack.c.b16 %v715, %v709
        %v854 = vpack.c.b16 %v722, %v716
        %v855 = vpack.c.b16 %v723, %v717
        %v856 = vpack.c.b16 %v724, %v718
        %v857 = vpack.c.b16 %v725, %v719
        %v858 = vpack.c.b16 %v726, %v720
        %v859 = vpack.c.b16 %v727, %v721
        %v860 = vpack.c.b16 %v734, %v728
        %v861 = vpack.c.b16 %v735, %v729
        %v862 = vpack.c.b16 %v736, %v730
        %v863 = vpack.c.b16 %v737, %v731
        %v864 = vpack.c.b16 %v738, %v732
        %v865 = vpack.c.b16 %v739, %v733
        %v866 = vpack.c.b16 %v746, %v740
        %v867 = vpack.c.b16 %v747, %v741
        %v868 = vpack.c.b16 %v748, %v742
        %v869 = vpack.c.b16 %v749, %v743
        %v870 = vpack.c.b16 %v750, %v744
        %v871 = vpack.c.b16 %v751, %v745
        %v872 = vpack.c.b16 %v758, %v752
        %v873 = vpack.c.b16 %v759, %v753
        %v874 = vpack.c.b16 %v760, %v754
        %v875 = vpack.c.b16 %v761, %v755
        %v876 = vpack.c.b16 %v762, %v756
        %v877 = vpack.c.b16 %v763, %v757
        %v878 = vpack.c.b16 %v770, %v764
        %v879 = vpack.c.b16 %v771, %v765
        %v880 = vpack.c.b16 %v772, %v766
        %v881 = vpack.c.b16 %v773, %v767
        %v882 = vpack.c.b16 %v774, %v768
        %v883 = vpack.c.b16 %v775, %v769
        %v884 = vpack.c.b16 %v782, %v776
        %v885 = vpack.c.b16 %v783, %v777
        %v886 = vpack.c.b16 %v784, %v778
        %v887 = vpack.c.b16 %v785, %v779
        %v888 = vpack.c.b16 %v786, %v780
        %v889 = vpack.c.b16 %v787, %v781
        %v890 = vpack.c.b16 %v794, %v788
        %v891 = vpack.c.b16 %v795, %v789
        %v892 = vpack.c.b16 %v796, %v790
        %v893 = vpack.c.b16 %v797, %v791
        %v894 = vpack.c.b16 %v798, %v792
        %v895 = vpack.c.b16 %v799, %v793
        %992 = vmatprep.subr.bf16.mxu0 %v801
        %993 = vmatpush1.bf16.msra.mxu0 %v800
        %994 = vmatprep.subr.bf16.mxu0 %v807
        %995 = vmatpush1.bf16.msra.mxu0 %v806
        %996 = vmatprep.subr.bf16.mxu0 %v813
        %997 = vmatpush1.bf16.msra.mxu0 %v812
        %998 = vmatprep.subr.bf16.mxu0 %v819
        %999 = vmatpush1.bf16.msra.mxu0 %v818
        %1000 = vmatprep.subr.bf16.mxu0 %v825
        %1001 = vmatpush1.bf16.msra.mxu0 %v824
        %1002 = vmatprep.subr.bf16.mxu0 %v831
        %1003 = vmatpush1.bf16.msra.mxu0 %v830
        %1004 = vmatprep.subr.bf16.mxu0 %v837
        %1005 = vmatpush1.bf16.msra.mxu0 %v836
        %1006 = vmatprep.subr.bf16.mxu0 %v843
        %1007 = vmatpush1.bf16.msra.mxu0 %v842
        %1008 = vmatprep.subr.bf16.mxu0 %v849
        %1009 = vmatpush1.bf16.msra.mxu0 %v848
        %1010 = vmatprep.subr.bf16.mxu0 %v855
        %1011 = vmatpush1.bf16.msra.mxu0 %v854
        %1012 = vmatprep.subr.bf16.mxu0 %v861
        %1013 = vmatpush1.bf16.msra.mxu0 %v860
        %1014 = vmatprep.subr.bf16.mxu0 %v867
        %1015 = vmatpush1.bf16.msra.mxu0 %v866
        %1016 = vmatprep.subr.bf16.mxu0 %v873
        %1017 = vmatpush1.bf16.msra.mxu0 %v872
        %1018 = vmatprep.subr.bf16.mxu0 %v879
        %1019 = vmatpush1.bf16.msra.mxu0 %v878
        %1020 = vmatprep.subr.bf16.mxu0 %v885
        %1021 = vmatpush1.bf16.msra.mxu0 %v884
        %1022 = vmatprep.subr.bf16.mxu0 %v891
        %1023 = vmatpush1.bf16.msra.mxu0 %v890
        %1024 = vmatprep.mubr.bf16.mxu0 %v409
        %1025 = vmatmul.mubr.bf16.gmra.mrb[0].mxu0 %v408
        %v1026 = vpop.f32.mrb[0].mxu0
        %v1027 = vadd.f32 0.0, %v1026
        %v1028 = vpop.f32.mrb[0].mxu0
        %v1029 = vadd.f32 0.0, %v1028
        %v1030 = vpop.f32.mrb[0].mxu0
        %v1031 = vadd.f32 0.0, %v1030
        %v1032 = vpop.f32.mrb[0].mxu0
        %v1033 = vadd.f32 0.0, %v1032
        %1034 = vmatprep.mubr.bf16.mxu0 %v411
        %1035 = vmatmul.mubr.bf16.gmra.mrb[0].mxu0 %v410
        %v1036 = vpop.f32.mrb[0].mxu0
        %v1037 = vadd.f32 0.0, %v1036
        %v1038 = vpop.f32.mrb[0].mxu0
        %v1039 = vadd.f32 0.0, %v1038
        %v1040 = vpop.f32.mrb[0].mxu0
        %v1041 = vadd.f32 0.0, %v1040
        %v1042 = vpop.f32.mrb[0].mxu0
        %v1043 = vadd.f32 0.0, %v1042
        %1044 = vmatprep.mubr.bf16.mxu0 %v413
        %1045 = vmatmul.mubr.bf16.gmra.mrb[0].mxu0 %v412
        %v1046 = vpop.f32.mrb[0].mxu0
        %v1047 = vadd.f32 0.0, %v1046
        %v1048 = vpop.f32.mrb[0].mxu0
        %v1049 = vadd.f32 0.0, %v1048
        %v1050 = vpop.f32.mrb[0].mxu0
        %v1051 = vadd.f32 0.0, %v1050
        %v1052 = vpop.f32.mrb[0].mxu0
        %v1053 = vadd.f32 0.0, %v1052
        %1054 = vmatprep.mubr.bf16.mxu0 %v415
        %1055 = vmatmul.mubr.bf16.gmra.mrb[0].mxu0 %v414
        %v1056 = vpop.f32.mrb[0].mxu0
        %v1057 = vadd.f32 0.0, %v1056
        %v1058 = vpop.f32.mrb[0].mxu0
        %v1059 = vadd.f32 0.0, %v1058
        %v1060 = vpop.f32.mrb[0].mxu0
        %v1061 = vpop.f32.mrb[0].mxu0
        %1062 = vdwg.mxu0
        %1063 = vmatprep.subr.bf16.mxu0 %v803
        %1064 = vmatpush1.bf16.msra.mxu0 %v802
        %1065 = vmatprep.subr.bf16.mxu0 %v809
        %1066 = vmatpush1.bf16.msra.mxu0 %v808
        %1067 = vmatprep.subr.bf16.mxu0 %v815
        %1068 = vmatpush1.bf16.msra.mxu0 %v814
        %1069 = vmatprep.subr.bf16.mxu0 %v821
        %1070 = vmatpush1.bf16.msra.mxu0 %v820
        %1071 = vmatprep.subr.bf16.mxu0 %v827
        %1072 = vmatpush1.bf16.msra.mxu0 %v826
        %1073 = vmatprep.subr.bf16.mxu0 %v833
        %1074 = vmatpush1.bf16.msra.mxu0 %v832
        %1075 = vmatprep.subr.bf16.mxu0 %v839
        %1076 = vmatpush1.bf16.msra.mxu0 %v838
        %1077 = vmatprep.subr.bf16.mxu0 %v845
        %1078 = vmatpush1.bf16.msra.mxu0 %v844
        %1079 = vmatprep.subr.bf16.mxu0 %v851
        %1080 = vmatpush1.bf16.msra.mxu0 %v850
        %1081 = vmatprep.subr.bf16.mxu0 %v857
        %1082 = vmatpush1.bf16.msra.mxu0 %v856
        %1083 = vmatprep.subr.bf16.mxu0 %v863
        %1084 = vmatpush1.bf16.msra.mxu0 %v862
        %1085 = vmatprep.subr.bf16.mxu0 %v869
        %1086 = vmatpush1.bf16.msra.mxu0 %v868
        %1087 = vmatprep.subr.bf16.mxu0 %v875
        %1088 = vmatpush1.bf16.msra.mxu0 %v874
        %1089 = vmatprep.subr.bf16.mxu0 %v881
        %1090 = vmatpush1.bf16.msra.mxu0 %v880
        %1091 = vmatprep.subr.bf16.mxu0 %v887
        %1092 = vmatpush1.bf16.msra.mxu0 %v886
        %1093 = vmatprep.subr.bf16.mxu0 %v893
        %1094 = vmatpush1.bf16.msra.mxu0 %v892
        %1095 = vmatprep.mubr.bf16.mxu0 %v409
        %1096 = vmatmul.mubr.bf16.gmra.mrb[0].mxu0 %v408
        %v1097 = vpop.f32.mrb[0].mxu0
        %v1098 = vadd.f32 0.0, %v1097
        %v1099 = vpop.f32.mrb[0].mxu0
        %v1100 = vadd.f32 0.0, %v1099
        %v1101 = vpop.f32.mrb[0].mxu0
        %v1102 = vadd.f32 0.0, %v1101
        %v1103 = vpop.f32.mrb[0].mxu0
        %v1104 = vadd.f32 0.0, %v1103
        %1105 = vmatprep.mubr.bf16.mxu0 %v411
        %1106 = vmatmul.mubr.bf16.gmra.mrb[0].mxu0 %v410
        %v1107 = vpop.f32.mrb[0].mxu0
        %v1108 = vadd.f32 0.0, %v1107
        %v1109 = vpop.f32.mrb[0].mxu0
        %v1110 = vadd.f32 0.0, %v1109
        %v1111 = vpop.f32.mrb[0].mxu0
        %v1112 = vadd.f32 0.0, %v1111
        %v1113 = vpop.f32.mrb[0].mxu0
        %v1114 = vadd.f32 0.0, %v1113
        %1115 = vmatprep.mubr.bf16.mxu0 %v413
        %1116 = vmatmul.mubr.bf16.gmra.mrb[0].mxu0 %v412
        %v1117 = vpop.f32.mrb[0].mxu0
        %v1118 = vadd.f32 0.0, %v1117
        %v1119 = vpop.f32.mrb[0].mxu0
        %v1120 = vadd.f32 0.0, %v1119
        %v1121 = vpop.f32.mrb[0].mxu0
        %v1122 = vadd.f32 0.0, %v1121
        %v1123 = vpop.f32.mrb[0].mxu0
        %v1124 = vadd.f32 0.0, %v1123
        %1125 = vmatprep.mubr.bf16.mxu0 %v415
        %1126 = vmatmul.mubr.bf16.gmra.mrb[0].mxu0 %v414
        %v1127 = vpop.f32.mrb[0].mxu0
        %v1128 = vadd.f32 0.0, %v1127
        %v1129 = vpop.f32.mrb[0].mxu0
        %v1130 = vadd.f32 0.0, %v1129
        %v1131 = vpop.f32.mrb[0].mxu0
        %v1132 = vpop.f32.mrb[0].mxu0
        %1133 = vdwg.mxu0
        %1134 = vmatprep.subr.bf16.mxu0 %v805
        %1135 = vmatpush1.bf16.msra.mxu0 %v804
        %1136 = vmatprep.subr.bf16.mxu0 %v811
        %1137 = vmatpush1.bf16.msra.mxu0 %v810
        %1138 = vmatprep.subr.bf16.mxu0 %v817
        %1139 = vmatpush1.bf16.msra.mxu0 %v816
        %1140 = vmatprep.subr.bf16.mxu0 %v823
        %1141 = vmatpush1.bf16.msra.mxu0 %v822
        %1142 = vmatprep.subr.bf16.mxu0 %v829
        %1143 = vmatpush1.bf16.msra.mxu0 %v828
        %1144 = vmatprep.subr.bf16.mxu0 %v835
        %1145 = vmatpush1.bf16.msra.mxu0 %v834
        %1146 = vmatprep.subr.bf16.mxu0 %v841
        %1147 = vmatpush1.bf16.msra.mxu0 %v840
        %1148 = vmatprep.subr.bf16.mxu0 %v847
        %1149 = vmatpush1.bf16.msra.mxu0 %v846
        %1150 = vmatprep.subr.bf16.mxu0 %v853
        %1151 = vmatpush1.bf16.msra.mxu0 %v852
        %1152 = vmatprep.subr.bf16.mxu0 %v859
        %1153 = vmatpush1.bf16.msra.mxu0 %v858
        %1154 = vmatprep.subr.bf16.mxu0 %v865
        %1155 = vmatpush1.bf16.msra.mxu0 %v864
        %1156 = vmatprep.subr.bf16.mxu0 %v871
        %1157 = vmatpush1.bf16.msra.mxu0 %v870
        %1158 = vmatprep.subr.bf16.mxu0 %v877
        %1159 = vmatpush1.bf16.msra.mxu0 %v876
        %1160 = vmatprep.subr.bf16.mxu0 %v883
        %1161 = vmatpush1.bf16.msra.mxu0 %v882
        %1162 = vmatprep.subr.bf16.mxu0 %v889
        %1163 = vmatpush1.bf16.msra.mxu0 %v888
        %1164 = vmatprep.subr.bf16.mxu0 %v895
        %1165 = vmatpush1.bf16.msra.mxu0 %v894
        %1166 = vmatprep.mubr.bf16.mxu0 %v409
        %1167 = vmatmul.mubr.bf16.gmra.mrb[0].mxu0 %v408
        %v1168 = vpop.f32.mrb[0].mxu0
        %v1169 = vadd.f32 0.0, %v1168
        %v1170 = vpop.f32.mrb[0].mxu0
        %v1171 = vadd.f32 0.0, %v1170
        %v1172 = vpop.f32.mrb[0].mxu0
        %v1173 = vadd.f32 0.0, %v1172
        %v1174 = vpop.f32.mrb[0].mxu0
        %v1175 = vadd.f32 0.0, %v1174
        %1176 = vmatprep.mubr.bf16.mxu0 %v411
        %1177 = vmatmul.mubr.bf16.gmra.mrb[0].mxu0 %v410
        %v1178 = vpop.f32.mrb[0].mxu0
        %v1179 = vadd.f32 0.0, %v1178
        %v1180 = vpop.f32.mrb[0].mxu0
        %v1181 = vadd.f32 0.0, %v1180
        %v1182 = vpop.f32.mrb[0].mxu0
        %v1183 = vadd.f32 0.0, %v1182
        %v1184 = vpop.f32.mrb[0].mxu0
        %v1185 = vadd.f32 0.0, %v1184
        %1186 = vmatprep.mubr.bf16.mxu0 %v413
        %1187 = vmatmul.mubr.bf16.gmra.mrb[0].mxu0 %v412
        %v1188 = vpop.f32.mrb[0].mxu0
        %v1189 = vadd.f32 0.0, %v1188
        %v1190 = vpop.f32.mrb[0].mxu0
        %v1191 = vadd.f32 0.0, %v1190
        %v1192 = vpop.f32.mrb[0].mxu0
        %v1193 = vadd.f32 0.0, %v1192
        %v1194 = vpop.f32.mrb[0].mxu0
        %v1195 = vadd.f32 0.0, %v1194
        %1196 = vmatprep.mubr.bf16.mxu0 %v415
        %1197 = vmatmul.mubr.bf16.gmra.mrb[0].mxu0 %v414
        %v1198 = vpop.f32.mrb[0].mxu0
        %v1199 = vadd.f32 0.0, %v1198
        %v1200 = vpop.f32.mrb[0].mxu0
        %v1201 = vadd.f32 0.0, %v1200
        %v1202 = vpop.f32.mrb[0].mxu0
        %v1203 = vpop.f32.mrb[0].mxu0
        %1204 = vdwg.mxu0
        %1205 = vst [vmem:[%s230] sm:$0xff] %v1027
        %1206 = vst [vmem:[%s230 + $0x8] sm:$0xff] %v1029
        %1207 = vst [vmem:[%s230 + $0x10] sm:$0xff] %v1098
        %1208 = vst [vmem:[%s230 + $0x18] sm:$0xff] %v1100
        %1209 = vst [vmem:[%s230 + $0x20] sm:$0xff] %v1169
        %1210 = vst [vmem:[%s230 + $0x28] sm:$0xff] %v1171
        %1211 = vst [vmem:[%s230 + $0x30] sm:$0xff] %v1031
        %1212 = vst [vmem:[%s230 + $0x38] sm:$0xff] %v1033
        %1213 = vst [vmem:[%s230 + $0x40] sm:$0xff] %v1102
        %1214 = vst [vmem:[%s230 + $0x48] sm:$0xff] %v1104
        %1215 = vst [vmem:[%s230 + $0x50] sm:$0xff] %v1173
        %1216 = vst [vmem:[%s230 + $0x58] sm:$0xff] %v1175
        %1217 = vst [vmem:[%s230 + $0x60] sm:$0xff] %v1037
        %1218 = vst [vmem:[%s230 + $0x68] sm:$0xff] %v1039
        %1219 = vst [vmem:[%s230 + $0x70] sm:$0xff] %v1108
        %1220 = vst [vmem:[%s230 + $0x78] sm:$0xff] %v1110
        %1221 = vst [vmem:[%s230 + $0x80] sm:$0xff] %v1179
        %1222 = vst [vmem:[%s230 + $0x88] sm:$0xff] %v1181
        %1223 = vst [vmem:[%s230 + $0x90] sm:$0xff] %v1041
        %1224 = vst [vmem:[%s230 + $0x98] sm:$0xff] %v1043
        %1225 = vst [vmem:[%s230 + $0xa0] sm:$0xff] %v1112
        %1226 = vst [vmem:[%s230 + $0xa8] sm:$0xff] %v1114
        %1227 = vst [vmem:[%s230 + $0xb0] sm:$0xff] %v1183
        %1228 = vst [vmem:[%s230 + $0xb8] sm:$0xff] %v1185
        %1229 = vst [vmem:[%s230 + $0xc0] sm:$0xff] %v1047
        %1230 = vst [vmem:[%s230 + $0xc8] sm:$0xff] %v1049
        %1231 = vst [vmem:[%s230 + $0xd0] sm:$0xff] %v1118
        %1232 = vst [vmem:[%s230 + $0xd8] sm:$0xff] %v1120
        %1233 = vst [vmem:[%s230 + $0xe0] sm:$0xff] %v1189
        %1234 = vst [vmem:[%s230 + $0xe8] sm:$0xff] %v1191
        %1235 = vst [vmem:[%s230 + $0xf0] sm:$0xff] %v1051
        %1236 = vst [vmem:[%s230 + $0xf8] sm:$0xff] %v1053
        %1237 = vst [vmem:[%s230 + $0x100] sm:$0xff] %v1122
        %1238 = vst [vmem:[%s230 + $0x108] sm:$0xff] %v1124
        %1239 = vst [vmem:[%s230 + $0x110] sm:$0xff] %v1193
        %1240 = vst [vmem:[%s230 + $0x118] sm:$0xff] %v1195
        %1241 = vst [vmem:[%s230 + $0x120] sm:$0x1] %v1057
        %1242 = vst [vmem:[%s230 + $0x128] sm:$0x1] %v1059
        %1243 = vst [vmem:[%s230 + $0x130] sm:$0x1] %v1128
        %1244 = vst [vmem:[%s230 + $0x138] sm:$0x1] %v1130
        %1245 = vst [vmem:[%s230 + $0x140] sm:$0x1] %v1199
        %1246 = vst [vmem:[%s230 + $0x148] sm:$0x1] %v1201
        %s1247 = sand.u32 %s119, 1
        %s1248 = scalar_lea.sflag [#allocation4], %s1247
        %s1249 = sand.u32 %s119, 1
        %s1250 = smul.addr %s1249, 336
        %s1251 = scalar_lea.vmem [#allocation7], %s1250
        // Predicated region
        $region45: #{tpu_custom_call.1} parent=35 // pred_check
          %p1252 = pneg %p129
        $region46: #{tpu_custom_call.1} parent=35 // pred_check_branch
          %1254 = sbr.rel (%p1252) target = $region48
        $region47: #{tpu_custom_call.1} parent=35 // pred_region
          %s1255 = smul.u32 6, %s22
          %s1257 = ssub.s32 5376, 5376
          %1258 = vsyncadd %s1248, %s1257
          %s1259 = smul.addr %s1255, 128
          %s1260 = scalar_lea.hbm %s4, %s1259
          %s1261 = sshll.u32 %s1251, 4
          %s1262 = int_to_ptr.vmem [resolvable:$true] %s1261
          %1267 = dma.vmem_to_hbm [thread:$0]  %s1262, 5376, %s1260, %s1248, 768, 1536, 48
        $region48: #{tpu_custom_call.1} parent=35 // pred_fallthru
          _
      $region36: #{tpu_custom_call.1} parent=5 // pred_fallthru
        _
      %p1268 = scmp.le.s32.totalorder 2, %s17
      // Predicated region
      $region49: #{tpu_custom_call.1} parent=5 // pred_check
        %p1269 = pneg %p1268
      $region50: #{tpu_custom_call.1} parent=5 // pred_check_branch
        %1271 = sbr.rel (%p1269) target = $region52
      $region51: #{tpu_custom_call.1} parent=5 // pred_region
        %s1272 = ssub.s32 %s17, 2
        // Predicated region
        $region53: #{tpu_custom_call.1} parent=51 // pred_check
          %p1273 = pneg %p135
        $region54: #{tpu_custom_call.1} parent=51 // pred_check_branch
          %1275 = sbr.rel (%p1273) target = $region56
        $region55: #{tpu_custom_call.1} parent=51 // pred_region
          %s1276 = sand.u32 %s120, 1
          %s1277 = scalar_lea.sflag [#allocation4], %s1276
          %s1278 = sand.u32 %s120, 1
          %s1279 = smul.addr %s1278, 336
          %s1280 = scalar_lea.vmem [#allocation7], %s1279
          %1281 = dma.done %s1277, 5376
        $region56: #{tpu_custom_call.1} parent=51 // pred_fallthru
          _
      $region52: #{tpu_custom_call.1} parent=5 // pred_fallthru
        _
    $region6: #{tpu_custom_call.1} parent=1 // loop_footer
      %s21 = sadd.s32 1, %s17
    $region7: #{tpu_custom_call.1} parent=1 // loop_footer_branch
      %16 = sbr.rel target = $region3
    $region8: #{tpu_custom_call.1} parent=1 // loop_exit
      _
    %1282 = vsyncpa [#allocation3], 1
    %s1283 = scalar_lea.sflag [#allocation3], 1
    %1284 = vsyncpa %s1283, 1
    %1285 = vsyncpa [#allocation6], 1
    %s1286 = scalar_lea.sflag [#allocation6], 1
    %1287 = vsyncpa %s1286, 1
    %1288 = vsyncpa [#allocation4], 1
    %s1289 = scalar_lea.sflag [#allocation4], 1
    %1290 = vsyncpa %s1289, 1

</llo_original>
